<compile_context>
chip_gen: v5e
topology: v5e:2x2
jax: 0.10.0
libtpu: 0.0.40
codegen_flags: <defaults>
</compile_context>

<pallas_src>
import jax
import jax.numpy as jnp
from jax.experimental import pallas as pl
from jax.experimental.pallas import tpu as pltpu

_FILTERS = 1
_H = 7
_W = 7
_BN_EPS = 1e-5
_SLOPE = 0.01  # F.leaky_relu default negative_slope


# ----------------------------- fused kernel ---------------------------------
def _residual_kernel(scale_ref, shift_ref, x_ref, o_ref):
    # Effective ResidualLayer: leaky_relu(norm2(x) + x), with the residual add
    # pre-folded into the affine (scale_res = bn_scale + 1). Compute in f32.
    t = x_ref[...].astype(jnp.float32) * scale_ref[0] + shift_ref[0]
    o_ref[...] = jnp.where(t >= 0, t, _SLOPE * t).astype(o_ref.dtype)


def _round_up(a, m):
    return (a + m - 1) // m * m


# ------------------------------- wrapper -------------------------------------
def residual_layer_forward(params, x, *, target_block_bytes=4 << 20):
    """x: (B, _FILTERS, 7, 7), NCHW like the PyTorch module."""
    B, C, H, W = x.shape
    assert C == _FILTERS == 1, "scalar BN fold assumes a single channel"
    total = B * C * H * W
    dtype = x.dtype
    itemsize = jnp.dtype(dtype).itemsize

    # ---- lane-dense 2D view (last dim a multiple of 128) -------------------
    lanes = 0
    for cand in (4096, 2048, 1024, 512, 256, 128):
        if total % cand == 0:
            lanes = cand
            break
    x_flat = x.reshape(-1)
    if lanes == 0:
        lanes = 128
        pad = _round_up(total, lanes) - total
        x_flat = jnp.pad(x_flat, (0, pad))
    rows = x_flat.shape[0] // lanes
    x2d = x_flat.reshape(rows, lanes)

    # ---- block size: ~target_block_bytes per input block, >=2 grid steps ---
    target_rows = max(8, (target_block_bytes // (lanes * itemsize)) // 8 * 8)
    block_rows = min(target_rows, _round_up(pl.cdiv(rows, 2), 8))
    if block_rows >= rows:
        block_rows = rows  # single block == full array (satisfies (8,128) rule)
    grid = (pl.cdiv(rows, block_rows),)

    smem = pl.BlockSpec(memory_space=pltpu.MemorySpace.SMEM)
    out2d = pl.pallas_call(
        _residual_kernel,
        out_shape=jax.ShapeDtypeStruct((rows, lanes), dtype),
        grid=grid,
        in_specs=[
            smem,  # scale_res (scalar)
            smem,  # shift     (scalar)
            pl.BlockSpec((block_rows, lanes), lambda i: (i, 0)),
        ],
        out_specs=pl.BlockSpec((block_rows, lanes), lambda i: (i, 0)),
        input_output_aliases={2: 0},  # x2d buffer may be reused for the output
        compiler_params=pltpu.CompilerParams(
            dimension_semantics=("parallel",),
            vmem_limit_bytes=40 << 20,
        ),
        cost_estimate=pl.CostEstimate(
            flops=3 * total,
            transcendentals=0,
            bytes_accessed=2 * total * itemsize,
        ),
    )(params["scale_res"], params["shift"], x2d)

    out_flat = out2d.reshape(-1)
    if out_flat.shape[0] != total:
        out_flat = out_flat[:total]
    return out_flat.reshape(B, C, H, W)


# --------------------------- deterministic init -------------------------------
def init_params(key):
    ks = jax.random.split(key, 4)
    # nn.BatchNorm2d(_FILTERS) -- eval mode, running stats folded to affine.
    gamma = 1.0 + 0.1 * jax.random.normal(ks[0], (_FILTERS,), jnp.float32)
    beta = 0.1 * jax.random.normal(ks[1], (_FILTERS,), jnp.float32)
    mean = 0.1 * jax.random.normal(ks[2], (_FILTERS,), jnp.float32)
    var = 0.5 + jax.random.uniform(ks[3], (_FILTERS,), jnp.float32)
    bn_scale = gamma / jnp.sqrt(var + _BN_EPS)
    bn_shift = beta - mean * bn_scale
    return {
        "bn_scale": bn_scale,          # raw eval-mode BN scale (for reference)
        "bn_shift": bn_shift,          # raw eval-mode BN shift
        "scale_res": bn_scale + 1.0,   # residual add folded into the affine
        "shift": bn_shift,
    }


if __name__ == "__main__":
    key = jax.random.PRNGKey(0)
    pkey, xkey, xkey2 = jax.random.split(key, 3)
    params = init_params(pkey)

    fwd = jax.jit(residual_layer_forward)

    def ref_fn(x):
        # Pure-JAX reference of the effective op: leaky_relu(norm2(x) + x).
        t = x * params["bn_scale"][0] + params["bn_shift"][0] + x
        return jnp.where(t >= 0, t, _SLOPE * t)

    # Small board batch (2, 1, 7, 7): single-block path.
    x_small = jax.random.normal(xkey, (2, _FILTERS, _H, _W), jnp.float32)
    out_small = fwd(params, x_small)
    jax.block_until_ready(out_small)
    assert out_small.shape == x_small.shape and out_small.dtype == jnp.float32
    assert jnp.allclose(out_small, ref_fn(x_small), atol=1e-5, rtol=1e-5)

    # Larger batch (256, 1, 7, 7): exercises the multi-step (ragged) grid path.
    x_big = jax.random.normal(xkey2, (256, _FILTERS, _H, _W), jnp.float32)
    out_big = fwd(params, x_big)
    jax.block_until_ready(out_big)
    assert jnp.allclose(out_big, ref_fn(x_big), atol=1e-5, rtol=1e-5)

    print("KERNEL_OK")
</pallas_src>

<mosaic_0001>
module attributes {stable_mosaic.version = 11 : i64} {
  func.func @_residual_kernel(%arg0: i32, %arg1: memref<1xf32, #tpu.memory_space<smem>>, %arg2: memref<1xf32, #tpu.memory_space<smem>>, %arg3: memref<1x128xf32, #tpu.memory_space<vmem>>, %arg4: memref<1x128xf32, #tpu.memory_space<vmem>>) attributes {dimension_semantics = [#tpu.dimension_semantics<parallel>], iteration_bounds = array<i64: 1>, scalar_prefetch = 0 : i64, scratch_operands = 0 : i64, tpu.core_type = #tpu.core_type<tc>, window_params = [{transform_indices = @transform_0, window_bounds = array<i64: 1>}, {transform_indices = @transform_1, window_bounds = array<i64: 1>}, {transform_indices = @transform_2, window_bounds = array<i64: 1, 128>}, {transform_indices = @transform_3, window_bounds = array<i64: 1, 128>}]} {
    %c0 = arith.constant 0 : index
    %c0_0 = arith.constant 0 : index
    %0 = vector.load %arg3[%c0, %c0_0] : memref<1x128xf32, #tpu.memory_space<vmem>>, vector<1x128xf32>
    %c0_1 = arith.constant 0 : index
    %1 = memref.load %arg1[%c0_1] : memref<1xf32, #tpu.memory_space<smem>>
    %2 = vector.broadcast %1 : f32 to vector<1x128xf32>
    %3 = arith.mulf %0, %2 : vector<1x128xf32>
    %c0_2 = arith.constant 0 : index
    %4 = memref.load %arg2[%c0_2] : memref<1xf32, #tpu.memory_space<smem>>
    %5 = vector.broadcast %4 : f32 to vector<1x128xf32>
    %6 = arith.addf %3, %5 : vector<1x128xf32>
    %cst = arith.constant 0.000000e+00 : f32
    %7 = vector.broadcast %cst : f32 to vector<1x128xf32>
    %8 = arith.cmpf oge, %6, %7 : vector<1x128xf32>
    %cst_3 = arith.constant 0.00999999977 : f32
    %9 = vector.broadcast %cst_3 : f32 to vector<1x128xf32>
    %10 = arith.mulf %9, %6 : vector<1x128xf32>
    %11 = arith.select %8, %6, %10 : vector<1x128xi1>, vector<1x128xf32>
    %c0_4 = arith.constant 0 : index
    %c0_5 = arith.constant 0 : index
    %12 = vector.load %arg4[%c0_4, %c0_5] : memref<1x128xf32, #tpu.memory_space<vmem>>, vector<1x128xf32>
    tpu.vector_store %arg4[%c0_4, %c0_5], %11 {strides = array<i32>} : memref<1x128xf32, #tpu.memory_space<vmem>>, vector<1x128xf32>,
    return
  }
  func.func @transform_0(%arg0: i32) -> i32 {
    %c0_i32 = arith.constant 0 : i32
    %c0_i32_0 = arith.constant 0 : i32
    return %c0_i32 : i32
  }
  func.func @transform_1(%arg0: i32) -> i32 {
    %c0_i32 = arith.constant 0 : i32
    %c0_i32_0 = arith.constant 0 : i32
    return %c0_i32 : i32
  }
  func.func @transform_2(%arg0: i32) -> (i32, i32) {
    %c0_i32 = arith.constant 0 : i32
    %c0_i32_0 = arith.constant 0 : i32
    return %arg0, %c0_i32 : i32, i32
  }
  func.func @transform_3(%arg0: i32) -> (i32, i32) {
    %c0_i32 = arith.constant 0 : i32
    %c0_i32_0 = arith.constant 0 : i32
    return %arg0, %c0_i32 : i32, i32
  }
}

</mosaic_0001>

<llo_original>
// kernel: residual_layer_forward.1
$region0: #{residual_layer_forward.1}
  #allocation0 [shape = 'u32[]', space=smem, size = 0x4, offset = 0x4, fixed_abs, tag = 'smem constant byte address 0x4 - core index']
  #allocation1 [shape = 'u32[72,128]{1,0:T(1,128)}', space=vmem, size = 0x9000, scoped, tag = 'internal scratch']
  #allocation2 [shape = 'f32[1]{0:T(128)S(6)}', space=smem, size = 0x200, scoped, tag = 'scoped memory for residual_layer_forward.1']
  #allocation3 [shape = 'f32[1]{0:T(128)S(6)}', space=smem, size = 0x200, scoped, tag = 'scoped memory for residual_layer_forward.1']
  %s0 = inlined_call_operand.<no memory space> [shape: f32[1], index: 0, kind: input, shape index: {}]
  %s1 = inlined_call_operand.<no memory space> [shape: f32[1], index: 1, kind: input, shape index: {}]
  %s2 = inlined_call_operand.vmem [shape: f32[1,128], index: 2, kind: input, shape index: {}, may-alias: {2,3}]
  %s3 = inlined_call_operand.vmem [shape: f32[1,128], index: 3, kind: output, shape index: {}, may-alias: {2,3}]
  %s4 = sld [smem:[#allocation0]]
  $region22: #{residual_layer_forward.1} parent=0
    _
  %s6 = ssub.s32 1, %s4
  %s7 = scalar_select 0, %s6, %s4
  %8 = sst [smem:[#allocation2]] %s0
  %9 = sst [smem:[#allocation3]] %s1
  // Predicated region
  $region2: #{residual_layer_forward.1} parent=0 // pred_check
    _
  $region3: #{residual_layer_forward.1} parent=0 // pred_check_branch
    %11 = sbr.rel (0) target = $region5
  $region4: #{residual_layer_forward.1} parent=0 // pred_region
    _
  $region5: #{residual_layer_forward.1} parent=0 // pred_fallthru
    _
  // Predicated region
  $region6: #{residual_layer_forward.1} parent=0 // pred_check
    _
  $region7: #{residual_layer_forward.1} parent=0 // pred_check_branch
    %13 = sbr.rel (0) target = $region9
  $region8: #{residual_layer_forward.1} parent=0 // pred_region
    _
  $region9: #{residual_layer_forward.1} parent=0 // pred_fallthru
    _
  // Predicated region
  $region10: #{residual_layer_forward.1} parent=0 // pred_check
    _
  $region11: #{residual_layer_forward.1} parent=0 // pred_check_branch
    %15 = sbr.rel (0) target = $region13
  $region12: #{residual_layer_forward.1} parent=0 // pred_region
    _
  $region13: #{residual_layer_forward.1} parent=0 // pred_fallthru
    _
  %v16 = vld [vmem:[%s2] sm:$0x1]
  %s17 = sld [smem:[#allocation2]]
  %v18 = vstv %s17
  %v19 = vmul.f32 %v16, %v18
  %s20 = sld [smem:[#allocation3]]
  %v21 = vstv %s20
  %v22 = vadd.f32 %v19, %v21
  %vm23 = vcmp.ge.f32.partialorder %v22, 0.0
  %v24 = vmul.f32 %v22, 0.01
  %v25 = vsel %vm23, %v22, %v24
  %26 = vst [vmem:[%s3] sm:$0x1] %v25
  // Predicated region
  $region14: #{residual_layer_forward.1} parent=0 // pred_check
    _
  $region15: #{residual_layer_forward.1} parent=0 // pred_check_branch
    %28 = sbr.rel (0) target = $region17
  $region16: #{residual_layer_forward.1} parent=0 // pred_region
    _
  $region17: #{residual_layer_forward.1} parent=0 // pred_fallthru
    _
  // Predicated region
  $region18: #{residual_layer_forward.1} parent=0 // pred_check
    _
  $region19: #{residual_layer_forward.1} parent=0 // pred_check_branch
    %30 = sbr.rel (0) target = $region21
  $region20: #{residual_layer_forward.1} parent=0 // pred_region
    _
  $region21: #{residual_layer_forward.1} parent=0 // pred_fallthru
    _

</llo_original>
